<compile_context>
chip_gen: v6e
topology: v6e:2x2x1
jax: 0.10.0
libtpu: 0.0.40
codegen_flags: <defaults>
</compile_context>

<pallas_src>
import functools

import jax
import jax.numpy as jnp
from jax.experimental import pallas as pl
from jax.experimental.pallas import tpu as pltpu

_LANE = 128
_FOLD_LANE_CHOICES = (1024, 512, 256, 128)  # lane-dense widths (multiples of 128)
_TILE_BYTES = 4 << 20                       # ~4 MiB per input tile per grid step
_VMEM_LIMIT_BYTES = 32 << 20                # explicit scoped-VMEM raise; safe on v5e/v6e/v7x
_SMALL_BYPASS_BYTES = 2 << 20               # below this, plain jnp so XLA fuses the op


def _round_up(n, m):
    return (n + m - 1) // m * m


def _round_down(n, m):
    return (n // m) * m


def _sublane_for(dtype):
    # f32 -> 8, bf16/f16 -> 16, int8/fp8 -> 32 (sub-32-bit dtypes pack along sublanes).
    itemsize = jnp.dtype(dtype).itemsize
    return max(8, 32 // max(itemsize, 1))


def _elementwise_kernel(x_ref, o_ref, *, func):
    # Pure elementwise map on the current VMEM tile. exp/recip go to the EUP
    # slot, multiplies to VALU; the kernel is HBM-bandwidth bound, so no
    # further compute-side tricks are needed.
    o_ref[...] = func(x_ref[...]).astype(o_ref.dtype)


def _lambda_pallas(func, x):
    """Apply an elementwise `func` via a tiled, double-buffered Pallas kernel.

    Layout: fold x into a lane-dense slab (rows, lanes) with lanes a multiple
    of 128. If the flattened size divides one of the candidate lane widths the
    reshape is a free contiguous view (no pad / no trailing slice); otherwise
    a <128-element zero pad is added. Rows are tiled across a 1-D grid so
    Pallas overlaps HBM<->VMEM DMA with compute; the last partial block is
    handled by Pallas (masked writes), so rows are never over-padded.
    """
    orig_shape = x.shape
    total = x.size
    in_dtype = x.dtype
    itemsize = jnp.dtype(in_dtype).itemsize
    sublane = _sublane_for(in_dtype)

    # Pick the widest lane-dense fold that needs no padding; fall back to a
    # 128-lane slab with a minimal zero pad only for truly ragged totals.
    lanes = None
    for cand in _FOLD_LANE_CHOICES:
        if total % cand == 0:
            lanes = cand
            break
    needs_pad = lanes is None
    if needs_pad:
        lanes = _LANE

    rows = pl.cdiv(total, lanes)
    flat = x.reshape(-1)
    if needs_pad:
        flat = jnp.pad(flat, (0, rows * lanes - total))
    slab = flat.reshape(rows, lanes)

    # Row tile: ~_TILE_BYTES per input tile, a multiple of the dtype sublane.
    cap = max(sublane, _round_down(_TILE_BYTES // (lanes * itemsize), sublane))
    tile_rows = min(cap, rows)
    if tile_rows >= rows and rows >= 2 * sublane:
        # Guarantee >=2 grid steps so both v7x TensorCores get streaming work.
        tile_rows = _round_up(pl.cdiv(rows, 2), sublane)
    # tile_rows is now either (a) a sublane multiple < rows (partial last
    # block handled by Pallas) or (b) equal to the full row extent (single
    # block; the full-array-dim exception to the (8,128) rule applies).

    grid = (pl.cdiv(rows, tile_rows),)

    # Derive the output dtype from the func itself so dtype-changing lambdas
    # (e.g. bf16 -> f32 upcast) are not silently truncated.
    out_dtype = jax.eval_shape(
        func, jax.ShapeDtypeStruct(slab.shape, slab.dtype)).dtype

    out_slab = pl.pallas_call(
        functools.partial(_elementwise_kernel, func=func),
        out_shape=jax.ShapeDtypeStruct((rows, lanes), out_dtype),
        grid=grid,
        in_specs=[pl.BlockSpec((tile_rows, lanes), lambda i: (i, 0))],
        out_specs=pl.BlockSpec((tile_rows, lanes), lambda i: (i, 0)),
        compiler_params=pltpu.CompilerParams(
            # Row tiles are independent: shard across v7x's 2 TensorCores.
            dimension_semantics=("parallel",),
            vmem_limit_bytes=_VMEM_LIMIT_BYTES),
    )(slab)

    out_flat = out_slab.reshape(-1)
    if needs_pad:
        out_flat = out_flat[:total]
    return out_flat.reshape(orig_shape)


class Lambda:
    """Lambda function that accepts tensors as input (Pallas-backed).

    Matches torch semantics: forward(x) = func(x).
    - elementwise=True: func is evaluated in a Pallas TPU kernel (tiled,
      pipelined) unless the tensor is small, in which case plain jnp is used
      so XLA can fuse the op with its producer/consumer.
    - elementwise=False: pure-shape funcs (flatten/view) stay as plain-JAX glue.
    """

    def __init__(self, func, elementwise=True, min_pallas_bytes=_SMALL_BYPASS_BYTES):
        self.func = func
        self.elementwise = elementwise
        self.min_pallas_bytes = min_pallas_bytes

    def __call__(self, x):
        if not self.elementwise:
            # TODO(synk): pure-shape lambdas (view/flatten) have no compute;
            # they stay as plain-JAX reshapes.
            return self.func(x)
        nbytes = x.size * jnp.dtype(x.dtype).itemsize
        if nbytes < self.min_pallas_bytes:
            # Small tensor: a custom-call round-trip costs more than the op;
            # let XLA fuse it into the surrounding VAE graph.
            return self.func(x)
        return _lambda_pallas(self.func, x)

    # PyTorch-style alias
    forward = __call__


if __name__ == "__main__":
    key = jax.random.PRNGKey(0)
    k1, k2, k3, k4 = jax.random.split(key, 4)

    # Representative elementwise Lambda as used in the VAE: std = exp(0.5 * logvar)
    func = lambda t: jnp.exp(0.5 * t)

    # 1) Required small VAE shape (2, 4, 16, 16): force the Pallas path.
    #    total=2048 divides 1024 -> free reshape, single (2, 1024) block.
    x_small = jax.random.normal(k1, (2, 4, 16, 16), dtype=jnp.float32)
    lam_forced = Lambda(func, min_pallas_bytes=0)
    y_small = jax.block_until_ready(lam_forced(x_small))
    assert y_small.shape == x_small.shape and y_small.dtype == x_small.dtype
    assert jnp.allclose(y_small, jnp.exp(0.5 * x_small), atol=1e-6, rtol=1e-6)

    # 2) Larger input exercising the tiled, double-buffered 2-step grid
    #    ((512, 1024) f32 tiles, no padding, partial-block machinery unused).
    x_big = jax.random.normal(k2, (8, 8, 128, 128), dtype=jnp.float32)
    y_big = jax.block_until_ready(lam_forced(x_big))
    assert jnp.allclose(y_big, jnp.exp(0.5 * x_big), atol=1e-6, rtol=1e-6)

    # 3) Flattened size not a multiple of 128 -> exercises the (tiny) zero-pad
    #    fold and trailing slice.
    x_odd = jax.random.normal(k3, (2, 3, 15, 15), dtype=jnp.float32)
    y_odd = jax.block_until_ready(lam_forced(x_odd))
    assert y_odd.shape == x_odd.shape
    assert jnp.allclose(y_odd, jnp.exp(0.5 * x_odd), atol=1e-6, rtol=1e-6)

    # 4) bf16 input: dtype-aware sublane (16) tiling, 2-step grid.
    x_bf16 = jax.random.normal(k4, (4, 64, 128), dtype=jnp.bfloat16)
    y_bf16 = jax.block_until_ready(lam_forced(x_bf16))
    assert y_bf16.shape == x_bf16.shape and y_bf16.dtype == x_bf16.dtype
    ref_bf16 = jnp.exp(0.5 * x_bf16)
    assert jnp.allclose(y_bf16.astype(jnp.float32), ref_bf16.astype(jnp.float32),
                        atol=2e-2, rtol=2e-2)

    # 5) Default dispatch: small tensors bypass the kernel (plain jnp, fused by XLA).
    lam_default = Lambda(func)
    y_bypass = jax.block_until_ready(lam_default(x_small))
    assert jnp.allclose(y_bypass, y_small, atol=1e-6, rtol=1e-6)

    # 6) Non-elementwise (flatten) usage stays plain-JAX glue.
    flatten_lambda = Lambda(lambda t: t.reshape(t.shape[0], -1), elementwise=False)
    z = jax.block_until_ready(flatten_lambda(x_small))
    assert z.shape == (2, 4 * 16 * 16)

    print("KERNEL_OK")
</pallas_src>

<mosaic_0001>
module attributes {stable_mosaic.version = 11 : i64} {
  func.func @_elementwise_kernel(%arg0: i32, %arg1: memref<2x1024xf32, #tpu.memory_space<vmem>>, %arg2: memref<2x1024xf32, #tpu.memory_space<vmem>>) attributes {dimension_semantics = [#tpu.dimension_semantics<parallel>], iteration_bounds = array<i64: 1>, scalar_prefetch = 0 : i64, scratch_operands = 0 : i64, tpu.core_type = #tpu.core_type<tc>, window_params = [{transform_indices = @transform_0, window_bounds = array<i64: 2, 1024>}, {transform_indices = @transform_1, window_bounds = array<i64: 2, 1024>}]} {
    %c0 = arith.constant 0 : index
    %c0_0 = arith.constant 0 : index
    %0 = vector.load %arg1[%c0, %c0_0] : memref<2x1024xf32, #tpu.memory_space<vmem>>, vector<2x1024xf32>
    %cst = arith.constant 5.000000e-01 : f32
    %1 = vector.broadcast %cst : f32 to vector<2x1024xf32>
    %2 = arith.mulf %1, %0 : vector<2x1024xf32>
    %3 = math.exp %2 : vector<2x1024xf32>
    %c0_1 = arith.constant 0 : index
    %c0_2 = arith.constant 0 : index
    %4 = vector.load %arg2[%c0_1, %c0_2] : memref<2x1024xf32, #tpu.memory_space<vmem>>, vector<2x1024xf32>
    tpu.vector_store %arg2[%c0_1, %c0_2], %3 {strides = array<i32>} : memref<2x1024xf32, #tpu.memory_space<vmem>>, vector<2x1024xf32>,
    return
  }
  func.func @transform_0(%arg0: i32) -> (i32, i32) {
    %c0_i32 = arith.constant 0 : i32
    %c0_i32_0 = arith.constant 0 : i32
    return %arg0, %c0_i32 : i32, i32
  }
  func.func @transform_1(%arg0: i32) -> (i32, i32) {
    %c0_i32 = arith.constant 0 : i32
    %c0_i32_0 = arith.constant 0 : i32
    return %arg0, %c0_i32 : i32, i32
  }
}

</mosaic_0001>

<llo_original>
// kernel: tpu_custom_call.1
$region0: #{tpu_custom_call.1}
  #allocation0 [shape = 'u32[]', space=smem, size = 0x4, offset = 0x4, fixed_abs, tag = 'smem constant byte address 0x4 - core index']
  #allocation1 [shape = 'u32[144,128]{1,0:T(1,128)}', space=vmem, size = 0x12000, scoped, tag = 'internal scratch']
  %s0 = inlined_call_operand.hbm [shape: f32[2,1024], index: 0, kind: input, shape index: {}]
  %s1 = inlined_call_operand.hbm [shape: f32[2,1024], index: 1, kind: output, shape index: {}]
  %s2 = sld [smem:[#allocation0]]
  $region18: #{tpu_custom_call.1} parent=0
    _
  %s4 = ssub.s32 1, %s2
  %s5 = scalar_select 0, %s4, %s2
  $region1: #{tpu_custom_call.1} parent=0
    #allocation2 [shape = 'u8[8192]{0}', space=vmem, size = 0x2000, scoped, tag = 'input window, operand 0, single buffered']
    #allocation3 [shape = 's32[1]{0}', space=sflag, size = 0x4, scoped, tag = 'scoped memory for tpu_custom_call.1']
    #allocation4 [shape = 's32[1]{0}', space=sflag, size = 0x4, scoped, tag = 'scoped memory for tpu_custom_call.1']
    #allocation5 [shape = 'u8[8192]{0}', space=vmem, size = 0x2000, scoped, tag = 'output window, operand 0, single buffered']
    %6 = vsyncpa [#allocation3], 0
    %7 = vsyncpa [#allocation4], 0
    // Predicated region
    $region2: #{tpu_custom_call.1} parent=1 // pred_check
      _
    $region3: #{tpu_custom_call.1} parent=1 // pred_check_branch
      %9 = sbr.rel (0) target = $region5
    $region4: #{tpu_custom_call.1} parent=1 // pred_region
      %s11 = ssub.s32 256, 256
      %12 = vsyncadd [#allocation3], %s11
      %s14 = sshll.u32 [#allocation2], 4
      %s15 = int_to_ptr.vmem [resolvable:$true] %s14
      %17 = dma.hbm_to_vmem [thread:$0]  %s0, 256, %s15, [#allocation3]
    $region5: #{tpu_custom_call.1} parent=1 // pred_fallthru
      _
    // Predicated region
    $region6: #{tpu_custom_call.1} parent=1 // pred_check
      _
    $region7: #{tpu_custom_call.1} parent=1 // pred_check_branch
      %19 = sbr.rel (0) target = $region9
    $region8: #{tpu_custom_call.1} parent=1 // pred_region
      %20 = dma.done [#allocation3], 256
    $region9: #{tpu_custom_call.1} parent=1 // pred_fallthru
      _
    %v21 = vld [vmem:[#allocation2] sm:$0xff]
    %v22 = vld [vmem:[#allocation2 + $0x8] sm:$0xff]
    %v23 = vmul.f32 %v21, 0.5
    %v24 = vmul.f32 %v22, 0.5
    %v25 = vmul.f32 %v23, 1.442695
    %v26 = vpow.pop %v25
    %v27 = vmul.f32 %v24, 1.442695
    %v28 = vpow.pop %v27
    %29 = vst [vmem:[#allocation5] sm:$0xff] %v26
    %30 = vst [vmem:[#allocation5 + $0x8] sm:$0xff] %v28
    // Predicated region
    $region10: #{tpu_custom_call.1} parent=1 // pred_check
      _
    $region11: #{tpu_custom_call.1} parent=1 // pred_check_branch
      %32 = sbr.rel (0) target = $region13
    $region12: #{tpu_custom_call.1} parent=1 // pred_region
      %s34 = ssub.s32 256, 256
      %35 = vsyncadd [#allocation4], %s34
      %s37 = sshll.u32 [#allocation5], 4
      %s38 = int_to_ptr.vmem [resolvable:$true] %s37
      %40 = dma.vmem_to_hbm [thread:$0]  %s38, 256, %s1, [#allocation4]
    $region13: #{tpu_custom_call.1} parent=1 // pred_fallthru
      _
    // Predicated region
    $region14: #{tpu_custom_call.1} parent=1 // pred_check
      _
    $region15: #{tpu_custom_call.1} parent=1 // pred_check_branch
      %42 = sbr.rel (0) target = $region17
    $region16: #{tpu_custom_call.1} parent=1 // pred_region
      %43 = dma.done [#allocation4], 256
    $region17: #{tpu_custom_call.1} parent=1 // pred_fallthru
      _
    %44 = vsyncpa [#allocation3], 1
    %45 = vsyncpa [#allocation4], 1

</llo_original>
